<compile_context>
chip_gen: v6e
topology: v6e:2x2x1
jax: 0.10.0
libtpu: 0.0.40
codegen_flags: <defaults>
</compile_context>

<pallas_src>
import functools

import jax
import jax.numpy as jnp
from jax.experimental import pallas as pl
from jax.experimental.pallas import tpu as pltpu

_EPS = 1e-8           # matches torch.nn.functional.cosine_similarity default eps
_EPS2 = _EPS * _EPS   # clamp on sum-of-squares <=> clamp on norm


def _ppm_prep_kernel(x_ref, w_ref, b_ref, xn_ref, t_ref):
    """Hoisted per-pixel work: L2-normalize x and apply the 1x1 conv (W @ x + b).

    x_ref : (1, C, tp)  channel-major pixel tile
    w_ref : (C, C)      1x1 conv weight (out_ch, in_ch)
    b_ref : (C, 1)      1x1 conv bias
    xn_ref: (1, C, tp)  normalized pixels  (stored in compute dtype)
    t_ref : (1, C, tp)  transformed pixels (stored in compute dtype)
    """
    x = x_ref[0].astype(jnp.float32)                                    # (C, tp)
    # rsqrt(max(sum x^2, eps^2)) == 1 / max(||x||, eps)  (torch cosine_similarity clamp).
    inv = jax.lax.rsqrt(jnp.maximum(jnp.sum(x * x, axis=0, keepdims=True), _EPS2))
    xn_ref[0] = (x * inv).astype(xn_ref.dtype)
    w = w_ref[...].astype(jnp.float32)
    b = b_ref[...].astype(jnp.float32)
    t_ref[0] = (jnp.dot(w, x, preferred_element_type=jnp.float32) + b).astype(t_ref.dtype)


def _ppm_main_kernel(xnk_ref, t_ref, xnq_ref, o_ref, *, gamma):
    """Similarity + propagation for one (batch, query-tile) grid point.

    xnk_ref: (1, C, Np)  normalized keys       (resident per batch element)
    t_ref  : (1, C, Np)  1x1-conv transform    (resident per batch element, hoisted)
    xnq_ref: (1, C, tq)  normalized query slab
    o_ref  : (1, C, tq)  output slab, lane-dense along pixels
    """
    xnk = xnk_ref[0]                                                    # (C, Np)
    xnq = xnq_ref[0]                                                    # (C, tq)
    t = t_ref[0]                                                        # (C, Np)

    # simT[j, i] = <xnk[:, j], xnq[:, i]>  -> (Np, tq).  Contracting the channel axis of
    # both operands keeps the propagation below a plain A@B (no transposed big operand).
    simT = jax.lax.dot_general(
        xnk, xnq, (((0,), (0,)), ((), ())), preferred_element_type=jnp.float32)
    simT = jnp.maximum(simT, 0.0)
    if gamma == 2:
        simT = simT * simT
    elif gamma != 1:
        simT = simT ** gamma                                            # static python int

    # out[c, i] = sum_j t[c, j] * simT[j, i]  -> (C, tq), plain matmul, f32 accumulation.
    out = jnp.dot(t, simT.astype(t.dtype), preferred_element_type=jnp.float32)
    o_ref[0] = out.astype(o_ref.dtype)


def ppm_forward(x_nchw, conv_w, conv_b, *, gamma=2, tq=256, compute_dtype=jnp.float32):
    """x_nchw: (B, C, H, W) float32; conv_w: (C, C); conv_b: (C,).

    compute_dtype: storage/operand dtype of the two big matmuls (f32 accumulation either
    way).  jnp.bfloat16 is recommended on v5e/v6e (MXU peak is bf16-only) and buys VMEM
    headroom on v7x; default is float32 to preserve tight accuracy (gamma squares error).
    """
    B, C, H, W = x_nchw.shape
    N = H * W
    assert tq % 128 == 0, "tq must be a multiple of the 128-wide lane axis"

    # Pad pixel count up to a multiple of tq.  Padded pixel vectors are zero, so they
    # normalize to zero, their similarity columns are zero, and they contribute nothing;
    # padded output columns are sliced off below.
    Np = ((N + tq - 1) // tq) * tq
    x_cn = x_nchw.reshape(B, C, N)                       # free reshape, no HBM transpose
    if Np != N:
        x_cn = jnp.pad(x_cn, ((0, 0), (0, 0), (0, Np - N)))
    bias = conv_b.reshape(C, 1)
    n_tiles = Np // tq
    esize = jnp.dtype(compute_dtype).itemsize

    # ---- stage 1 (hoisted): per-pixel normalization + 1x1 conv, one pass over x -------
    xn, t_arr = pl.pallas_call(
        _ppm_prep_kernel,
        out_shape=(jax.ShapeDtypeStruct((B, C, Np), compute_dtype),
                   jax.ShapeDtypeStruct((B, C, Np), compute_dtype)),
        grid_spec=pltpu.PrefetchScalarGridSpec(
            num_scalar_prefetch=0,
            grid=(B, n_tiles),
            in_specs=[
                pl.BlockSpec((1, C, tq), lambda b, q: (b, 0, q)),   # x pixel tile
                pl.BlockSpec((C, C), lambda b, q: (0, 0)),          # conv weight (full)
                pl.BlockSpec((C, 1), lambda b, q: (0, 0)),          # conv bias (full)
            ],
            out_specs=[
                pl.BlockSpec((1, C, tq), lambda b, q: (b, 0, q)),   # xn
                pl.BlockSpec((1, C, tq), lambda b, q: (b, 0, q)),   # t
            ],
        ),
        compiler_params=pltpu.CompilerParams(
            dimension_semantics=("parallel", "parallel")),
    )(x_cn, conv_w, bias)

    # ---- stage 2: similarity slab + propagation ---------------------------------------
    # Per-step VMEM: double-buffered blocks + live f32 intermediates (simT slab, out).
    block_bytes = (2 * C * Np * esize       # resident normalized keys (double-buffered)
                   + 2 * C * Np * esize     # resident transform t     (double-buffered)
                   + 2 * C * tq * esize     # query slab
                   + 2 * C * tq * 4)        # output slab (f32)
    live_bytes = 4 * (Np * tq + C * tq) + C * Np * esize
    vmem_limit = int(min(max(block_bytes + live_bytes + (4 << 20), 32 << 20), 64 << 20))

    cost = pl.CostEstimate(
        flops=int(4 * B * Np * Np * C),                    # sim + propagation matmuls
        transcendentals=0,
        bytes_accessed=int(B * C * Np * (3 * esize + 4)))

    kernel = functools.partial(_ppm_main_kernel, gamma=gamma)
    out_cn = pl.pallas_call(
        kernel,
        out_shape=jax.ShapeDtypeStruct((B, C, Np), jnp.float32),
        grid_spec=pltpu.PrefetchScalarGridSpec(
            num_scalar_prefetch=0,
            grid=(B, n_tiles),
            in_specs=[
                pl.BlockSpec((1, C, Np), lambda b, q: (b, 0, 0)),   # keys: resident per b
                pl.BlockSpec((1, C, Np), lambda b, q: (b, 0, 0)),   # t:    resident per b
                pl.BlockSpec((1, C, tq), lambda b, q: (b, 0, q)),   # query slab
            ],
            out_specs=pl.BlockSpec((1, C, tq), lambda b, q: (b, 0, q)),
        ),
        compiler_params=pltpu.CompilerParams(
            dimension_semantics=("parallel", "parallel"),   # batch x row-tiles -> both TCs
            vmem_limit_bytes=vmem_limit),
        cost_estimate=cost,
    )(xn, t_arr, xn)

    # Drop pixel padding; reshape back to NCHW (free, no transpose).
    return out_cn[:, :, :N].reshape(B, C, H, W)


def ppm_reference(x_nchw, conv_w, conv_b, *, gamma=2):
    """Pure-JAX reference mirroring the PyTorch module, for verification."""
    B, C, H, W = x_nchw.shape
    x = x_nchw.reshape(B, C, H * W)                       # (B, C, N)
    norm = jnp.maximum(jnp.sqrt(jnp.sum(x * x, axis=1, keepdims=True)), _EPS)
    xn = x / norm
    sim = jnp.einsum("bci,bcj->bij", xn, xn)              # (B, N, N)
    sim = jnp.maximum(sim, 0.0) ** gamma
    t = jnp.einsum("oc,bcn->bon", conv_w, x) + conv_b[None, :, None]  # (B, C, N)
    out = jnp.einsum("bij,bcj->bci", sim, t)              # (B, C, N)
    return out.reshape(B, C, H, W)


if __name__ == "__main__":
    key = jax.random.PRNGKey(0)
    k_x, k_w, k_b = jax.random.split(key, 3)

    B, C, H, W = 2, 4, 16, 16
    gamma = 2

    x = jax.random.normal(k_x, (B, C, H, W), dtype=jnp.float32)

    # Deterministic Conv2d(chan, chan, 1) parameter init (kaiming-uniform-like bounds).
    fan_in = C  # 1x1 kernel
    bound = 1.0 / jnp.sqrt(fan_in)
    conv_w = jax.random.uniform(k_w, (C, C), minval=-bound, maxval=bound, dtype=jnp.float32)
    conv_b = jax.random.uniform(k_b, (C,), minval=-bound, maxval=bound, dtype=jnp.float32)

    ref = ppm_reference(x, conv_w, conv_b, gamma=gamma)

    # f32 path (default): matches the PyTorch reference to tight tolerance.
    out = jax.block_until_ready(ppm_forward(x, conv_w, conv_b, gamma=gamma))
    assert out.shape == (B, C, H, W), out.shape
    assert jnp.allclose(out, ref, atol=1e-4, rtol=1e-4), float(jnp.max(jnp.abs(out - ref)))

    # bf16-operand path (v5e/v6e MXU throughput, v7x VMEM headroom): loose sanity check,
    # since gamma=2 squares the bf16 relative error.
    out_bf16 = jax.block_until_ready(
        ppm_forward(x, conv_w, conv_b, gamma=gamma, compute_dtype=jnp.bfloat16))
    rel = float(jnp.max(jnp.abs(out_bf16 - ref)) / (jnp.max(jnp.abs(ref)) + 1e-6))
    assert rel < 0.1, rel

    print("KERNEL_OK")
</pallas_src>

<mosaic_0001>
module attributes {stable_mosaic.version = 11 : i64} {
  func.func @_ppm_prep_kernel(%arg0: i32, %arg1: i32, %arg2: memref<1x4x256xf32, #tpu.memory_space<vmem>>, %arg3: memref<4x4xf32, #tpu.memory_space<vmem>>, %arg4: memref<4x1xf32, #tpu.memory_space<vmem>>, %arg5: memref<1x4x256xf32, #tpu.memory_space<vmem>>, %arg6: memref<1x4x256xf32, #tpu.memory_space<vmem>>) attributes {dimension_semantics = [#tpu.dimension_semantics<parallel>, #tpu.dimension_semantics<parallel>], iteration_bounds = array<i64: 2, 1>, scalar_prefetch = 0 : i64, scratch_operands = 0 : i64, tpu.core_type = #tpu.core_type<tc>, window_params = [{transform_indices = @transform_0, window_bounds = array<i64: 1, 4, 256>}, {pipeline_mode = #tpu.pipeline_mode<synchronous>, transform_indices = @transform_1, window_bounds = array<i64: 4, 4>}, {pipeline_mode = #tpu.pipeline_mode<synchronous>, transform_indices = @transform_2, window_bounds = array<i64: 4, 1>}, {transform_indices = @transform_3, window_bounds = array<i64: 1, 4, 256>}, {transform_indices = @transform_4, window_bounds = array<i64: 1, 4, 256>}]} {
    %c0 = arith.constant 0 : index
    %c0_0 = arith.constant 0 : index
    %c0_1 = arith.constant 0 : index
    %0 = vector.load %arg2[%c0, %c0_0, %c0_1] : memref<1x4x256xf32, #tpu.memory_space<vmem>>, vector<1x4x256xf32>
    %1 = vector.shape_cast %0 : vector<1x4x256xf32> to vector<4x256xf32>
    %2 = arith.mulf %1, %1 : vector<4x256xf32>
    %cst = arith.constant dense<0.000000e+00> : vector<256xf32>
    %3 = vector.multi_reduction <add>, %2, %cst [0] : vector<4x256xf32> to vector<256xf32>
    %4 = vector.shape_cast %3 : vector<256xf32> to vector<1x256xf32>
    %cst_2 = arith.constant 1.000000e-16 : f32
    %5 = vector.broadcast %cst_2 : f32 to vector<1x256xf32>
    %6 = arith.maximumf %4, %5 : vector<1x256xf32>
    %7 = math.rsqrt %6 : vector<1x256xf32>
    %8 = vector.broadcast %7 : vector<1x256xf32> to vector<4x256xf32>
    %9 = arith.mulf %1, %8 : vector<4x256xf32>
    %c0_3 = arith.constant 0 : index
    %c0_4 = arith.constant 0 : index
    %c0_5 = arith.constant 0 : index
    %10 = vector.load %arg5[%c0_3, %c0_4, %c0_5] : memref<1x4x256xf32, #tpu.memory_space<vmem>>, vector<1x4x256xf32>
    %11 = vector.shape_cast %10 : vector<1x4x256xf32> to vector<4x256xf32>
    %12 = vector.shape_cast %9 : vector<4x256xf32> to vector<1x4x256xf32>
    tpu.vector_store %arg5[%c0_3, %c0_4, %c0_5], %12 {strides = array<i32>} : memref<1x4x256xf32, #tpu.memory_space<vmem>>, vector<1x4x256xf32>,
    %c0_6 = arith.constant 0 : index
    %c0_7 = arith.constant 0 : index
    %13 = vector.load %arg3[%c0_6, %c0_7] : memref<4x4xf32, #tpu.memory_space<vmem>>, vector<4x4xf32>
    %c0_8 = arith.constant 0 : index
    %c0_9 = arith.constant 0 : index
    %14 = vector.load %arg4[%c0_8, %c0_9] : memref<4x1xf32, #tpu.memory_space<vmem>>, vector<4x1xf32>
    %cst_10 = arith.constant dense<0.000000e+00> : vector<4x256xf32>
    %15 = tpu.matmul %13, %1, %cst_10 {dimension_numbers = #tpu.dot_dimension_numbers<[1], [0], [0], [1], [0, 0, 1, 1], [], []>} : vector<4x4xf32>, vector<4x256xf32>, vector<4x256xf32> -> vector<4x256xf32>
    %16 = vector.broadcast %14 : vector<4x1xf32> to vector<4x256xf32>
    %17 = arith.addf %15, %16 : vector<4x256xf32>
    %c0_11 = arith.constant 0 : index
    %c0_12 = arith.constant 0 : index
    %c0_13 = arith.constant 0 : index
    %18 = vector.load %arg6[%c0_11, %c0_12, %c0_13] : memref<1x4x256xf32, #tpu.memory_space<vmem>>, vector<1x4x256xf32>
    %19 = vector.shape_cast %18 : vector<1x4x256xf32> to vector<4x256xf32>
    %20 = vector.shape_cast %17 : vector<4x256xf32> to vector<1x4x256xf32>
    tpu.vector_store %arg6[%c0_11, %c0_12, %c0_13], %20 {strides = array<i32>} : memref<1x4x256xf32, #tpu.memory_space<vmem>>, vector<1x4x256xf32>,
    return
  }
  func.func @transform_0(%arg0: i32, %arg1: i32) -> (i32, i32, i32) {
    %c0_i32 = arith.constant 0 : i32
    %c0_i32_0 = arith.constant 0 : i32
    return %arg0, %c0_i32, %arg1 : i32, i32, i32
  }
  func.func @transform_1(%arg0: i32, %arg1: i32) -> (i32, i32) {
    %c0_i32 = arith.constant 0 : i32
    %c0_i32_0 = arith.constant 0 : i32
    %c0_i32_1 = arith.constant 0 : i32
    return %c0_i32, %c0_i32_0 : i32, i32
  }
  func.func @transform_2(%arg0: i32, %arg1: i32) -> (i32, i32) {
    %c0_i32 = arith.constant 0 : i32
    %c0_i32_0 = arith.constant 0 : i32
    %c0_i32_1 = arith.constant 0 : i32
    return %c0_i32, %c0_i32_0 : i32, i32
  }
  func.func @transform_3(%arg0: i32, %arg1: i32) -> (i32, i32, i32) {
    %c0_i32 = arith.constant 0 : i32
    %c0_i32_0 = arith.constant 0 : i32
    return %arg0, %c0_i32, %arg1 : i32, i32, i32
  }
  func.func @transform_4(%arg0: i32, %arg1: i32) -> (i32, i32, i32) {
    %c0_i32 = arith.constant 0 : i32
    %c0_i32_0 = arith.constant 0 : i32
    return %arg0, %c0_i32, %arg1 : i32, i32, i32
  }
}

</mosaic_0001>

<llo_original>
// kernel: tpu_custom_call.1
$region0: #{tpu_custom_call.1}
  #allocation0 [shape = 'u32[]', space=smem, size = 0x4, offset = 0x4, fixed_abs, tag = 'smem constant byte address 0x4 - core index']
  #allocation1 [shape = 'u32[144,128]{1,0:T(1,128)}', space=vmem, size = 0x12000, scoped, tag = 'internal scratch']
  %s0 = inlined_call_operand.hbm [shape: f32[2,4,256], index: 0, kind: input, shape index: {}]
  %s1 = inlined_call_operand.vmem [shape: f32[4,4], index: 1, kind: input, shape index: {}]
  %s2 = inlined_call_operand.vmem [shape: f32[4,1], index: 2, kind: input, shape index: {}]
  %s3 = inlined_call_operand.hbm [shape: f32[2,4,256], index: 3, kind: output, shape index: {0}]
  %s4 = inlined_call_operand.hbm [shape: f32[2,4,256], index: 4, kind: output, shape index: {1}]
  %5 = xla_tuple %s3, %s4
  %s6 = sld [smem:[#allocation0]]
  $region57: #{tpu_custom_call.1} parent=0
    _
  %s8 = ssub.s32 1, %s6
  %s9 = scalar_select 0, %s8, %s6
  $region1: #{tpu_custom_call.1} parent=0
    #allocation2 [shape = 'u8[8192]{0}', space=vmem, size = 0x2000, scoped, tag = 'input window, operand 0']
    #allocation3 [shape = 's32[2]{0}', space=sflag, size = 0x8, scoped, tag = 'scoped memory for tpu_custom_call.1']
    #allocation4 [shape = 's32[2]{0}', space=sflag, size = 0x8, scoped, tag = 'scoped memory for tpu_custom_call.1']
    #allocation5 [shape = 'u8[8192]{0}', space=vmem, size = 0x2000, scoped, tag = 'output window, operand 0']
    #allocation6 [shape = 'u8[8192]{0}', space=vmem, size = 0x2000, scoped, tag = 'output window, operand 1']
    #allocation7 [shape = 's32[2]{0}', space=sflag, size = 0x8, scoped, tag = 'scoped memory for tpu_custom_call.1']
    %10 = vsyncpa [#allocation3], 0
    %s11 = scalar_lea.sflag [#allocation3], 1
    %12 = vsyncpa %s11, 0
    %13 = vsyncpa [#allocation4], 0
    %s14 = scalar_lea.sflag [#allocation4], 1
    %15 = vsyncpa %s14, 0
    %16 = vsyncpa [#allocation7], 0
    %s17 = scalar_lea.sflag [#allocation7], 1
    %18 = vsyncpa %s17, 0
    loop: start=0, step=1, limit=4
    $region2: #{tpu_custom_call.1} parent=1 // loop_pre_header
      _
    $region3: #{tpu_custom_call.1} parent=1 // loop_header
      %s20 = sphi 0, %s24
      %p21 = scmp.ge.s32.totalorder %s20, 4
      %s27 = sphi 0, %s39
      %s28 = sphi 0, %s35
      %s29 = sphi 0, %s27
      %s30 = sphi 0, %s28
      %s31 = sphi 0, %s29
      %s32 = sphi 0, %s30
      %s44 = sphi 0, %s46
      %s47 = sphi 0, %s44
      %s48 = sphi 0, %s47
      %s64 = sphi 0, %s48
      %s68 = sphi 0, %s68
      %s70 = sphi 0, %s68
      %s71 = sphi 0, %s70
      %s85 = sphi 0, %s71
      %s89 = sphi 0, %s89
      %s91 = sphi 0, %s89
      %s92 = sphi 0, %s91
      %s106 = sphi 0, %s92
      %s114 = sphi 0, %s116
      %s117 = sphi 0, %s114
      %s118 = sphi 0, %s117
      %s134 = sphi 0, %s118
      %s142 = sphi 0, %s144
      %s145 = sphi 0, %s142
      %s146 = sphi 0, %s145
      %s162 = sphi 0, %s146
    $region4: #{tpu_custom_call.1} parent=1 // loop_header_branch
      %23 = sbr.rel (%p21) target = $region8
    $region5: #{tpu_custom_call.1} parent=1 // loop_body
      %s25 = ssub.s32 %s20, 1
      %s26 = ssub.s32 %s20, 2
      %s33 = sadd.s32 1, %s28
      %p34 = scmp.ge.s32.totalorder %s33, 1
      %s35 = scalar_select %p34, 0, %s33
      %s36 = sadd.s32 1, %s27
      %s37 = scalar_select %p34, %s36, %s27
      %p38 = scmp.ge.s32.totalorder %s37, 2
      %s39 = scalar_select %p38, 0, %s37
      %s40 = ssub.s32 %s27, %s39
      %s41 = ssub.s32 %s28, %s35
      %s42 = sor.u32 %s40, %s41
      %p43 = scmp.eq.s32.totalorder %s42, 0
      %s45 = sadd.s32 %s44, 1
      %s46 = scalar_select %p43, %s44, %s45
      %p49 = pneg %p43
      %p50 = scmp.eq.s32.totalorder %s20, 1
      %p51 = por %p49, %p50
      %p52 = scmp.ne.s32.totalorder %s44, %s47
      %p53 = scmp.eq.s32.totalorder %s20, 0
      %p54 = por %p52, %p53
      %p55 = scmp.ne.s32.totalorder %s44, %s47
      %p56 = scmp.eq.s32.totalorder %s25, 1
      %p57 = por %p55, %p56
      %p58 = scmp.ne.s32.totalorder %s47, %s48
      %p59 = scmp.eq.s32.totalorder %s25, 0
      %p60 = por %p58, %p59
      %p61 = scmp.ne.s32.totalorder %s47, %s48
      %p62 = scmp.eq.s32.totalorder %s26, 1
      %p63 = por %p61, %p62
      %p65 = scmp.ne.s32.totalorder %s48, %s64
      %p66 = scmp.eq.s32.totalorder %s26, 0
      %p67 = por %p65, %p66
      %s69 = sadd.s32 %s68, 1
      %p72 = scmp.eq.s32.totalorder %s20, 1
      %p73 = scmp.ne.s32.totalorder %s68, %s70
      %p74 = scmp.eq.s32.totalorder %s20, 0
      %p75 = por %p73, %p74
      %p76 = scmp.ne.s32.totalorder %s68, %s70
      %p77 = scmp.eq.s32.totalorder %s25, 1
      %p78 = por %p76, %p77
      %p79 = scmp.ne.s32.totalorder %s70, %s71
      %p80 = scmp.eq.s32.totalorder %s25, 0
      %p81 = por %p79, %p80
      %p82 = scmp.ne.s32.totalorder %s70, %s71
      %p83 = scmp.eq.s32.totalorder %s26, 1
      %p84 = por %p82, %p83
      %p86 = scmp.ne.s32.totalorder %s71, %s85
      %p87 = scmp.eq.s32.totalorder %s26, 0
      %p88 = por %p86, %p87
      %s90 = sadd.s32 %s89, 1
      %p93 = scmp.eq.s32.totalorder %s20, 1
      %p94 = scmp.ne.s32.totalorder %s89, %s91
      %p95 = scmp.eq.s32.totalorder %s20, 0
      %p96 = por %p94, %p95
      %p97 = scmp.ne.s32.totalorder %s89, %s91
      %p98 = scmp.eq.s32.totalorder %s25, 1
      %p99 = por %p97, %p98
      %p100 = scmp.ne.s32.totalorder %s91, %s92
      %p101 = scmp.eq.s32.totalorder %s25, 0
      %p102 = por %p100, %p101
      %p103 = scmp.ne.s32.totalorder %s91, %s92
      %p104 = scmp.eq.s32.totalorder %s26, 1
      %p105 = por %p103, %p104
      %p107 = scmp.ne.s32.totalorder %s92, %s106
      %p108 = scmp.eq.s32.totalorder %s26, 0
      %p109 = por %p107, %p108
      %s110 = ssub.s32 %s27, %s39
      %s111 = ssub.s32 %s28, %s35
      %s112 = sor.u32 %s110, %s111
      %p113 = scmp.eq.s32.totalorder %s112, 0
      %s115 = sadd.s32 %s114, 1
      %s116 = scalar_select %p113, %s114, %s115
      %p119 = pneg %p113
      %p120 = scmp.eq.s32.totalorder %s20, 1
      %p121 = por %p119, %p120
      %p122 = scmp.ne.s32.totalorder %s114, %s117
      %p123 = scmp.eq.s32.totalorder %s20, 0
      %p124 = por %p122, %p123
      %p125 = scmp.ne.s32.totalorder %s114, %s117
      %p126 = scmp.eq.s32.totalorder %s25, 1
      %p127 = por %p125, %p126
      %p128 = scmp.ne.s32.totalorder %s117, %s118
      %p129 = scmp.eq.s32.totalorder %s25, 0
      %p130 = por %p128, %p129
      %p131 = scmp.ne.s32.totalorder %s117, %s118
      %p132 = scmp.eq.s32.totalorder %s26, 1
      %p133 = por %p131, %p132
      %p135 = scmp.ne.s32.totalorder %s118, %s134
      %p136 = scmp.eq.s32.totalorder %s26, 0
      %p137 = por %p135, %p136
      %s138 = ssub.s32 %s27, %s39
      %s139 = ssub.s32 %s28, %s35
      %s140 = sor.u32 %s138, %s139
      %p141 = scmp.eq.s32.totalorder %s140, 0
      %s143 = sadd.s32 %s142, 1
      %s144 = scalar_select %p141, %s142, %s143
      %p147 = pneg %p141
      %p148 = scmp.eq.s32.totalorder %s20, 1
      %p149 = por %p147, %p148
      %p150 = scmp.ne.s32.totalorder %s142, %s145
      %p151 = scmp.eq.s32.totalorder %s20, 0
      %p152 = por %p150, %p151
      %p153 = scmp.ne.s32.totalorder %s142, %s145
      %p154 = scmp.eq.s32.totalorder %s25, 1
      %p155 = por %p153, %p154
      %p156 = scmp.ne.s32.totalorder %s145, %s146
      %p157 = scmp.eq.s32.totalorder %s25, 0
      %p158 = por %p156, %p157
      %p159 = scmp.ne.s32.totalorder %s145, %s146
      %p160 = scmp.eq.s32.totalorder %s26, 1
      %p161 = por %p159, %p160
      %p163 = scmp.ne.s32.totalorder %s146, %s162
      %p164 = scmp.eq.s32.totalorder %s26, 0
      %p165 = por %p163, %p164
      %p166 = scmp.le.s32.totalorder 1, %s20
      %p167 = scmp.lt.s32.totalorder %s20, 3
      %p168 = pnand %p166, %p167
      %p169 = pneg %p168
      // Predicated region
      $region9: #{tpu_custom_call.1} parent=5 // pred_check
        _
      $region10: #{tpu_custom_call.1} parent=5 // pred_check_branch
        %171 = sbr.rel (%p168) target = $region12
      $region11: #{tpu_custom_call.1} parent=5 // pred_region
        %s172 = ssub.s32 %s20, 1
        // Predicated region
        $region13: #{tpu_custom_call.1} parent=11 // pred_check
          %p173 = pneg %p81
        $region14: #{tpu_custom_call.1} parent=11 // pred_check_branch
          %175 = sbr.rel (%p173) target = $region16
        $region15: #{tpu_custom_call.1} parent=11 // pred_region
          _
        $region16: #{tpu_custom_call.1} parent=11 // pred_fallthru
          _
        // Predicated region
        $region17: #{tpu_custom_call.1} parent=11 // pred_check
          %p176 = pneg %p102
        $region18: #{tpu_custom_call.1} parent=11 // pred_check_branch
          %178 = sbr.rel (%p176) target = $region20
        $region19: #{tpu_custom_call.1} parent=11 // pred_region
          _
        $region20: #{tpu_custom_call.1} parent=11 // pred_fallthru
          _
      $region12: #{tpu_custom_call.1} parent=5 // pred_fallthru
        _
      %p179 = scmp.lt.s32.totalorder %s20, 2
      // Predicated region
      $region21: #{tpu_custom_call.1} parent=5 // pred_check
        %p180 = pneg %p179
      $region22: #{tpu_custom_call.1} parent=5 // pred_check_branch
        %182 = sbr.rel (%p180) target = $region24
      $region23: #{tpu_custom_call.1} parent=5 // pred_region
        // Predicated region
        $region25: #{tpu_custom_call.1} parent=23 // pred_check
          %p183 = pneg %p54
        $region26: #{tpu_custom_call.1} parent=23 // pred_check_branch
          %185 = sbr.rel (%p183) target = $region28
        $region27: #{tpu_custom_call.1} parent=23 // pred_region
          %s186 = sand.u32 %s44, 1
          %s187 = scalar_lea.sflag [#allocation3], %s186
          %s188 = sand.u32 %s44, 1
          %s189 = smul.addr %s188, 8
          %s190 = scalar_lea.vmem [#allocation2], %s189
          %s191 = smul.u32 2, %s28
          %s193 = ssub.s32 128, 128
          %194 = vsyncadd %s187, %s193
          %s195 = smul.addr %s27, 2
          %s196 = sadd.s32 %s191, %s195
          %s197 = smul.addr %s196, 64
          %s198 = scalar_lea.hbm %s0, %s197
          %s200 = sshll.u32 %s190, 4
          %s201 = int_to_ptr.vmem [resolvable:$true] %s200
          %203 = dma.hbm_to_vmem [thread:$0]  %s198, 128, %s201, %s187
        $region28: #{tpu_custom_call.1} parent=23 // pred_fallthru
          _
      $region24: #{tpu_custom_call.1} parent=5 // pred_fallthru
        _
      %p204 = scmp.le.s32.totalorder 1, %s20
      %p205 = scmp.lt.s32.totalorder %s20, 3
      %p206 = pnand %p204, %p205
      %p207 = pneg %p206
      // Predicated region
      $region29: #{tpu_custom_call.1} parent=5 // pred_check
        _
      $region30: #{tpu_custom_call.1} parent=5 // pred_check_branch
        %209 = sbr.rel (%p206) target = $region32
      $region31: #{tpu_custom_call.1} parent=5 // pred_region
        %s210 = ssub.s32 %s20, 1
        %s211 = sand.u32 %s47, 1
        %s212 = scalar_lea.sflag [#allocation3], %s211
        %s213 = sand.u32 %s47, 1
        %s214 = smul.addr %s213, 8
        %s215 = scalar_lea.vmem [#allocation2], %s214
        // Predicated region
        $region33: #{tpu_custom_call.1} parent=31 // pred_check
          %p216 = pneg %p60
        $region34: #{tpu_custom_call.1} parent=31 // pred_check_branch
          %218 = sbr.rel (%p216) target = $region36
        $region35: #{tpu_custom_call.1} parent=31 // pred_region
          %219 = dma.done %s212, 128
        $region36: #{tpu_custom_call.1} parent=31 // pred_fallthru
          _
        %s220 = sand.u32 %s47, 1
        %s221 = scalar_lea.sflag [#allocation3], %s220
        %s222 = sand.u32 %s47, 1
        %s223 = smul.addr %s222, 8
        %s224 = scalar_lea.vmem [#allocation2], %s223
        %p225 = pneg %p60
        %p226 = pneg %p57
        %p227 = pneg %p81
        %p228 = pneg %p78
        %p229 = pneg %p102
        %p230 = pneg %p99
        %p231 = pneg %p130
        %p232 = pneg %p127
        %s233 = sand.u32 %s117, 1
        %s234 = scalar_lea.sflag [#allocation4], %s233
        %s235 = sand.u32 %s117, 1
        %s236 = smul.addr %s235, 8
        %s237 = scalar_lea.vmem [#allocation5], %s236
        %p238 = pneg %p158
        %p239 = pneg %p155
        %s240 = sand.u32 %s145, 1
        %s241 = scalar_lea.sflag [#allocation7], %s240
        %s242 = sand.u32 %s145, 1
        %s243 = smul.addr %s242, 8
        %s244 = scalar_lea.vmem [#allocation6], %s243
        %s245 = smul.u32 2, %s30
        %s246 = smul.u32 2, %s30
        %s247 = smul.u32 2, %s30
        %v248 = vld [vmem:[%s215] sm:$0xff]
        %v249 = vmul.f32 %v248, %v248
        %v251 = vcombine.high %v249, %v249
        %vm253 = vcmask 1043456
        %v254 = vsel %vm253, %v249, 0.0
        %v255 = vrot.slane %v254, 4
        %v256 = vadd.f32 %v254, %v255
        %v257 = vrot.slane %v256, 2
        %v258 = vadd.f32 %v256, %v257
        %v259 = vrot.slane %v258, 1
        %v260 = vadd.f32 %v258, %v259
        %v261 = vsel %vm253, %v251, 0.0
        %v262 = vrot.slane %v261, 4
        %v263 = vadd.f32 %v261, %v262
        %v264 = vrot.slane %v263, 2
        %v265 = vadd.f32 %v263, %v264
        %v266 = vrot.slane %v265, 1
        %v267 = vadd.f32 %v265, %v266
        %v268 = vmax.f32 %v260, 1e-16
        %v269 = vmax.f32 %v267, 1e-16
        %v270 = vrsqrt.pop %v268
        %v271 = vrsqrt.pop %v269
        %v274 = vcombine.low %v270, %v271
        %v276 = vmul.f32 %v248, %v274
        %277 = vst [vmem:[%s237] sm:$0xff] %v276
        %v278 = vld [vmem:[%s1] sm:$0xf]
        %v279 = vld [vmem:[%s2] sm:$0xf]
        %281 = vset.pattern.permute.xlu0 0
        %282 = vperm.xlu0 %281, %v279
        %v283 = vpop.permute.xlu0 %282
        %v286 = vcombine.high %v248, %v248
        %vm287 = vcmask 31744
        %v289 = vsel %vm287, %v278, 0
        %v291 = vsel %vm253, %v248, 0
        %v293 = vsel %vm253, %v286, 0
        %295 = vmatprep.subr.mxu0 0.0
        %296 = vmatpush1.msra.mxu0 0.0
        %297 = vmatprep.subr.mxu0 0.0
        %298 = vmatpush1.msra.mxu0 0.0
        %299 = vmatprep.subr.mxu0 0.0
        %300 = vmatpush1.msra.mxu0 0.0
        %301 = vmatprep.subr.mxu0 0.0
        %302 = vmatpush1.msra.mxu0 0.0
        %303 = vmatprep.subr.mxu0 0.0
        %304 = vmatpush1.msra.mxu0 0.0
        %305 = vmatprep.subr.mxu0 0.0
        %306 = vmatpush1.msra.mxu0 0.0
        %307 = vmatprep.subr.mxu0 0.0
        %308 = vmatpush1.msra.mxu0 0.0
        %309 = vmatprep.subr.mxu0 0.0
        %310 = vmatpush1.msra.mxu0 0.0
        %311 = vmatprep.subr.mxu0 0.0
        %312 = vmatpush1.msra.mxu0 0.0
        %313 = vmatprep.subr.mxu0 0.0
        %314 = vmatpush1.msra.mxu0 0.0
        %315 = vmatprep.subr.mxu0 0.0
        %316 = vmatpush1.msra.mxu0 0.0
        %317 = vmatprep.subr.mxu0 0.0
        %318 = vmatpush1.msra.mxu0 0.0
        %319 = vmatprep.subr.mxu0 0.0
        %320 = vmatpush1.msra.mxu0 0.0
        %321 = vmatprep.subr.mxu0 0.0
        %322 = vmatpush1.msra.mxu0 0.0
        %323 = vmatprep.subr.mxu0 0.0
        %324 = vmatpush1.msra.mxu0 0.0
        %325 = vmatprep.subr.mxu0 %v293
        %326 = vmatpush1.msra.mxu0 %v291
        %327 = vmatprep.subr.mxu0 0.0
        %328 = vmatpush2.msra.mxu0 0.0
        %329 = vmatprep.subr.mxu0 0.0
        %330 = vmatpush2.msra.mxu0 0.0
        %331 = vmatprep.subr.mxu0 0.0
        %332 = vmatpush2.msra.mxu0 0.0
        %333 = vmatprep.subr.mxu0 0.0
        %334 = vmatpush2.msra.mxu0 0.0
        %335 = vmatprep.subr.mxu0 0.0
        %336 = vmatpush2.msra.mxu0 0.0
        %337 = vmatprep.subr.mxu0 0.0
        %338 = vmatpush2.msra.mxu0 0.0
        %339 = vmatprep.subr.mxu0 0.0
        %340 = vmatpush2.msra.mxu0 0.0
        %341 = vmatprep.subr.mxu0 0.0
        %342 = vmatpush2.msra.mxu0 0.0
        %343 = vmatprep.subr.mxu0 0.0
        %344 = vmatpush2.msra.mxu0 0.0
        %345 = vmatprep.subr.mxu0 0.0
        %346 = vmatpush2.msra.mxu0 0.0
        %347 = vmatprep.subr.mxu0 0.0
        %348 = vmatpush2.msra.mxu0 0.0
        %349 = vmatprep.subr.mxu0 0.0
        %350 = vmatpush2.msra.mxu0 0.0
        %351 = vmatprep.subr.mxu0 0.0
        %352 = vmatpush2.msra.mxu0 0.0
        %353 = vmatprep.subr.mxu0 0.0
        %354 = vmatpush2.msra.mxu0 0.0
        %355 = vmatprep.subr.mxu0 0.0
        %356 = vmatpush2.msra.mxu0 0.0
        %357 = vmatprep.subr.mxu0 0.0
        %358 = vmatpush2.msra.mxu0 0.0
        %359 = vmatprep.mubr.f32.mxu0 0.0
        %360 = vmatmul.mubr.f32.gmra.mxu0 %v289
        %v361 = vpop.f32.mrf.mxu0
        %v362 = vadd.f32 %v283, %v361
        %v363 = vpop.f32.mrf.mxu0
        %v364 = vadd.f32 %v283, %v363
        %365 = vdwg.mxu0
        %v368 = vcombine.low %v362, %v364
        %370 = vst [vmem:[%s244] sm:$0xff] %v368
        %s371 = sand.u32 %s117, 1
        %s372 = scalar_lea.sflag [#allocation4], %s371
        %s373 = sand.u32 %s117, 1
        %s374 = smul.addr %s373, 8
        %s375 = scalar_lea.vmem [#allocation5], %s374
        %s376 = sand.u32 %s145, 1
        %s377 = scalar_lea.sflag [#allocation7], %s376
        %s378 = sand.u32 %s145, 1
        %s379 = smul.addr %s378, 8
        %s380 = scalar_lea.vmem [#allocation6], %s379
        // Predicated region
        $region37: #{tpu_custom_call.1} parent=31 // pred_check
          %p381 = pneg %p127
        $region38: #{tpu_custom_call.1} parent=31 // pred_check_branch
          %383 = sbr.rel (%p381) target = $region40
        $region39: #{tpu_custom_call.1} parent=31 // pred_region
          %s384 = smul.u32 2, %s30
          %s386 = ssub.s32 128, 128
          %387 = vsyncadd %s372, %s386
          %s388 = smul.addr %s29, 2
          %s389 = sadd.s32 %s384, %s388
          %s390 = smul.addr %s389, 64
          %s391 = scalar_lea.hbm %s3, %s390
          %s393 = sshll.u32 %s375, 4
          %s394 = int_to_ptr.vmem [resolvable:$true] %s393
          %396 = dma.vmem_to_hbm [thread:$0]  %s394, 128, %s391, %s372
        $region40: #{tpu_custom_call.1} parent=31 // pred_fallthru
          _
        // Predicated region
        $region41: #{tpu_custom_call.1} parent=31 // pred_check
          %p397 = pneg %p155
        $region42: #{tpu_custom_call.1} parent=31 // pred_check_branch
          %399 = sbr.rel (%p397) target = $region44
        $region43: #{tpu_custom_call.1} parent=31 // pred_region
          %s400 = smul.u32 2, %s30
          %s402 = ssub.s32 128, 128
          %403 = vsyncadd %s377, %s402
          %s404 = smul.addr %s29, 2
          %s405 = sadd.s32 %s400, %s404
          %s406 = smul.addr %s405, 64
          %s407 = scalar_lea.hbm %s4, %s406
          %s409 = sshll.u32 %s380, 4
          %s410 = int_to_ptr.vmem [resolvable:$true] %s409
          %412 = dma.vmem_to_hbm [thread:$0]  %s410, 128, %s407, %s377
        $region44: #{tpu_custom_call.1} parent=31 // pred_fallthru
          _
      $region32: #{tpu_custom_call.1} parent=5 // pred_fallthru
        _
      %p413 = scmp.le.s32.totalorder 2, %s20
      // Predicated region
      $region45: #{tpu_custom_call.1} parent=5 // pred_check
        %p414 = pneg %p413
      $region46: #{tpu_custom_call.1} parent=5 // pred_check_branch
        %416 = sbr.rel (%p414) target = $region48
      $region47: #{tpu_custom_call.1} parent=5 // pred_region
        %s417 = ssub.s32 %s20, 2
        // Predicated region
        $region49: #{tpu_custom_call.1} parent=47 // pred_check
          %p418 = pneg %p133
        $region50: #{tpu_custom_call.1} parent=47 // pred_check_branch
          %420 = sbr.rel (%p418) target = $region52
        $region51: #{tpu_custom_call.1} parent=47 // pred_region
          %s421 = sand.u32 %s118, 1
          %s422 = scalar_lea.sflag [#allocation4], %s421
          %s423 = sand.u32 %s118, 1
          %s424 = smul.addr %s423, 8
          %s425 = scalar_lea.vmem [#allocation5], %s424
          %426 = dma.done %s422, 128
        $region52: #{tpu_custom_call.1} parent=47 // pred_fallthru
          _
        // Predicated region
        $region53: #{tpu_custom_call.1} parent=47 // pred_check
          %p427 = pneg %p161
        $region54: #{tpu_custom_call.1} parent=47 // pred_check_branch
          %429 = sbr.rel (%p427) target = $region56
        $region55: #{tpu_custom_call.1} parent=47 // pred_region
          %s430 = sand.u32 %s146, 1
          %s431 = scalar_lea.sflag [#allocation7], %s430
          %s432 = sand.u32 %s146, 1
          %s433 = smul.addr %s432, 8
          %s434 = scalar_lea.vmem [#allocation6], %s433
          %435 = dma.done %s431, 128
        $region56: #{tpu_custom_call.1} parent=47 // pred_fallthru
          _
      $region48: #{tpu_custom_call.1} parent=5 // pred_fallthru
        _
    $region6: #{tpu_custom_call.1} parent=1 // loop_footer
      %s24 = sadd.s32 1, %s20
    $region7: #{tpu_custom_call.1} parent=1 // loop_footer_branch
      %19 = sbr.rel target = $region3
    $region8: #{tpu_custom_call.1} parent=1 // loop_exit
      _
    %436 = vsyncpa [#allocation3], 1
    %s437 = scalar_lea.sflag [#allocation3], 1
    %438 = vsyncpa %s437, 1
    %439 = vsyncpa [#allocation4], 1
    %s440 = scalar_lea.sflag [#allocation4], 1
    %441 = vsyncpa %s440, 1
    %442 = vsyncpa [#allocation7], 1
    %s443 = scalar_lea.sflag [#allocation7], 1
    %444 = vsyncpa %s443, 1

</llo_original>
